<compile_context>
chip_gen: v5e
topology: v5e:2x2
jax: 0.10.0
libtpu: 0.0.40
codegen_flags: <defaults>
</compile_context>

<pallas_src>
import functools

import jax
import jax.numpy as jnp
from jax.experimental import pallas as pl
from jax.experimental.pallas import tpu as pltpu


def _cdiv(a, b):
    return -(-a // b)


def _round_up(v, m):
    return (v + m - 1) // m * m


def _default_vmem_limit():
    """Scoped-VMEM limit: <= 3/4 of physical, capped at 96 MiB (128 MiB parts)."""
    try:
        phys = int(pltpu.get_tpu_info().vmem_capacity_bytes)
        if phys <= 0:
            raise ValueError("bad vmem capacity")
    except Exception:
        phys = 64 * 1024 * 1024  # conservative fallback: v7x physical VMEM
    return int(min(phys * 3 // 4, 96 * 1024 * 1024))


def _choose_batch_tile(b, row_cost_bytes, budget_bytes):
    """Batch-tile size for the single-pass path, or None -> use chunked path.

    row_cost_bytes already counts in/out double buffers + f32 temporaries.
    """
    sub = 8  # sublane granularity for the second-to-last block dim
    tb_cap = budget_bytes // max(1, row_cost_bytes)
    if tb_cap >= b:
        # Whole batch fits; still split so the grid has >=2 steps -> DMA/compute
        # overlap and megacore sharding on v7x (neutral on single-TC parts).
        if b >= 4 * sub:
            target = 4
        elif b >= 2 * sub:
            target = 2
        else:
            return b  # tiny batch: single block (block dim == full array dim)
        tb = _round_up(_cdiv(b, target), sub)
        return b if tb >= b else tb
    tb = (tb_cap // sub) * sub
    return tb if tb >= sub else None


# ----------------------------- single-pass path -----------------------------


def _softmax_row_kernel(x_ref, o_ref, *, smooth, n):
    # x_ref / o_ref: (tb, N) tile resident in VMEM; N is the true row length,
    # so reductions over the logical last dim need no explicit masking.
    x = x_ref[...].astype(jnp.float32)
    m = jnp.max(x, axis=-1, keepdims=True)
    e = jnp.exp(x - m)
    s = jnp.sum(e, axis=-1, keepdims=True)
    inv = pl.reciprocal(s, approx=False)  # (tb, 1): negligible either way
    if 0.0 < smooth < 1.0:
        # Fold (1 - smooth) into the per-row scale: no extra full-tile multiply.
        p = e * (inv * (1.0 - smooth)) + (smooth / float(n))
    else:
        p = e * inv
    o_ref[...] = p.astype(o_ref.dtype)


def _single_pass(x_flat, tb, smooth, n, vmem_limit):
    b = x_flat.shape[0]
    kernel = functools.partial(_softmax_row_kernel, smooth=float(smooth), n=n)
    return pl.pallas_call(
        kernel,
        out_shape=jax.ShapeDtypeStruct((b, n), x_flat.dtype),
        grid=(_cdiv(b, tb),),
        in_specs=[pl.BlockSpec((tb, n), lambda i: (i, 0))],
        out_specs=pl.BlockSpec((tb, n), lambda i: (i, 0)),
        compiler_params=pltpu.CompilerParams(
            dimension_semantics=("parallel",),
            vmem_limit_bytes=vmem_limit,
        ),
    )(x_flat)


# --------------------------- two-pass (large rows) ---------------------------


def _stats_kernel(x_ref, lse_ref, m_sc, l_sc, *, n, tn):
    # Online (running max/sum) reduction over N-chunks -> per-row logsumexp.
    j = pl.program_id(1)

    @pl.when(j == 0)
    def _():
        m_sc[...] = jnp.full(m_sc.shape, -jnp.inf, m_sc.dtype)
        l_sc[...] = jnp.zeros(l_sc.shape, l_sc.dtype)

    x = x_ref[...].astype(jnp.float32)
    if n % tn != 0:
        # Mask the out-of-bounds tail lanes of the last (partial) chunk.
        col = j * tn + jax.lax.broadcasted_iota(jnp.int32, x.shape, 1)
        x = jnp.where(col < n, x, -jnp.inf)

    m_prev = m_sc[...]
    m_new = jnp.maximum(m_prev, jnp.max(x, axis=-1, keepdims=True))
    l_sc[...] = l_sc[...] * jnp.exp(m_prev - m_new) + jnp.sum(
        jnp.exp(x - m_new), axis=-1, keepdims=True
    )
    m_sc[...] = m_new

    @pl.when(j == pl.num_programs(1) - 1)
    def _():
        lse_ref[...] = m_sc[...] + jnp.log(l_sc[...])


def _apply_kernel(x_ref, lse_ref, o_ref, *, smooth, n):
    x = x_ref[...].astype(jnp.float32)
    p = jnp.exp(x - lse_ref[...])
    if 0.0 < smooth < 1.0:
        p = p * (1.0 - smooth) + (smooth / float(n))
    o_ref[...] = p.astype(o_ref.dtype)
    # Out-of-bounds lanes/rows of boundary blocks are dropped on the store.


def _two_pass(x_flat, tb, tn, smooth, n, vmem_limit):
    b = x_flat.shape[0]
    nb = _cdiv(b, tb)
    nc = _cdiv(n, tn)

    lse = pl.pallas_call(
        functools.partial(_stats_kernel, n=n, tn=tn),
        out_shape=jax.ShapeDtypeStruct((b, 1), jnp.float32),
        grid=(nb, nc),
        in_specs=[pl.BlockSpec((tb, tn), lambda i, j: (i, j))],
        out_specs=pl.BlockSpec((tb, 1), lambda i, j: (i, 0)),
        scratch_shapes=[
            pltpu.VMEM((tb, 1), jnp.float32),  # running max
            pltpu.VMEM((tb, 1), jnp.float32),  # running sum
        ],
        compiler_params=pltpu.CompilerParams(
            dimension_semantics=("parallel", "arbitrary"),
            vmem_limit_bytes=vmem_limit,
        ),
    )(x_flat)

    return pl.pallas_call(
        functools.partial(_apply_kernel, smooth=float(smooth), n=n),
        out_shape=jax.ShapeDtypeStruct((b, n), x_flat.dtype),
        grid=(nb, nc),
        in_specs=[
            pl.BlockSpec((tb, tn), lambda i, j: (i, j)),
            pl.BlockSpec((tb, 1), lambda i, j: (i, 0)),
        ],
        out_specs=pl.BlockSpec((tb, tn), lambda i, j: (i, j)),
        compiler_params=pltpu.CompilerParams(
            dimension_semantics=("parallel", "parallel"),
            vmem_limit_bytes=vmem_limit,
        ),
    )(x_flat, lse)


# --------------------------------- wrapper -----------------------------------


def sample_softmax(x, squeeze_channels=False, smooth=0.0, *, vmem_limit_bytes=None):
    """Pallas equivalent of SampleSoftmax.forward. x is NCHW (or any (B, ...))."""
    s = x.shape
    b = s[0]
    n = 1
    for d in s[1:]:
        n *= d
    x_flat = x.reshape(b, n)  # contiguous reshape: no extra HBM pass

    itemsize = jnp.dtype(x.dtype).itemsize
    limit = int(vmem_limit_bytes) if vmem_limit_bytes else _default_vmem_limit()
    budget = max(limit // 2, limit - 2 * 1024 * 1024)

    # Per-row VMEM cost of a resident tile: in + out double buffers in the
    # input dtype (4 * itemsize) plus ~3-4 f32 compute temporaries (the kernel
    # upcasts the whole tile), counted as 16 bytes/element for headroom.
    elem_cost = 4 * itemsize + 16
    row_cost = n * elem_cost
    tb = _choose_batch_tile(b, row_cost, budget)

    if tb is not None:
        y_flat = _single_pass(x_flat, tb, smooth, n, limit)
    else:
        # Rows too large for one block: chunked online-softmax (two passes,
        # 2 reads + 1 write of x instead of blowing the VMEM limit).
        tb2 = b if b < 8 else 8
        tn = (budget // max(1, tb2 * 128 * elem_cost)) * 128
        tn = max(128, min(tn, _round_up(n, 128)))
        y_flat = _two_pass(x_flat, tb2, tn, smooth, n, limit)

    y = y_flat.reshape(s)
    if squeeze_channels and len(s) > 1 and s[1] == 1:
        # torch.squeeze(x, 1) semantics: only squeeze when the dim is size 1.
        y = jnp.squeeze(y, axis=1)
    return y


# ------------------------------- reference/test -------------------------------


def _reference(x, squeeze_channels=False, smooth=0.0):
    s = x.shape
    xf = x.reshape(s[0], -1).astype(jnp.float32)
    p = jax.nn.softmax(xf, axis=-1)
    if 0.0 < smooth < 1.0:
        p = p * (1.0 - smooth) + smooth / float(xf.shape[1])
    p = p.reshape(s).astype(x.dtype)
    if squeeze_channels and len(s) > 1 and s[1] == 1:
        p = jnp.squeeze(p, axis=1)
    return p


if __name__ == "__main__":
    key = jax.random.PRNGKey(0)
    cases = [
        # (shape, squeeze_channels, smooth, vmem_limit_override)
        ((2, 4, 16, 16), False, 0.1, None),    # lane-aligned N = 1024
        ((2, 1, 16, 16), True, 0.0, None),     # squeeze_channels path
        ((2, 3, 10, 10), False, 0.05, None),   # ragged N = 300 (masked tail store)
        ((20, 4, 16, 16), False, 0.1, None),   # >=2 grid steps, partial batch tile
        ((16, 3, 64, 64), False, 0.1, 4 * 1024 * 1024),  # forces chunked two-pass path
    ]
    for idx, (shape, squeeze, smooth, limit) in enumerate(cases):
        key, sub = jax.random.split(key)
        x = jax.random.normal(sub, shape, dtype=jnp.float32)

        y = jax.block_until_ready(
            sample_softmax(
                x, squeeze_channels=squeeze, smooth=smooth, vmem_limit_bytes=limit
            )
        )
        y_ref = _reference(x, squeeze_channels=squeeze, smooth=smooth)

        assert y.shape == y_ref.shape, (idx, y.shape, y_ref.shape)
        assert jnp.allclose(y, y_ref, atol=1e-6, rtol=1e-4), (
            f"case {idx}: mismatch vs reference"
        )
        # Each sample's probabilities (with or without smoothing) sum to ~1.
        row_sums = y.reshape(shape[0], -1).sum(axis=-1)
        assert jnp.allclose(
            row_sums, jnp.ones((shape[0],), jnp.float32), atol=1e-4
        ), f"case {idx}: rows do not sum to 1"

    print("KERNEL_OK")
</pallas_src>

<mosaic_0001>
module attributes {stable_mosaic.version = 11 : i64} {
  func.func @_softmax_row_kernel(%arg0: i32, %arg1: memref<2x1024xf32, #tpu.memory_space<vmem>>, %arg2: memref<2x1024xf32, #tpu.memory_space<vmem>>) attributes {dimension_semantics = [#tpu.dimension_semantics<parallel>], iteration_bounds = array<i64: 1>, scalar_prefetch = 0 : i64, scratch_operands = 0 : i64, tpu.core_type = #tpu.core_type<tc>, window_params = [{transform_indices = @transform_0, window_bounds = array<i64: 2, 1024>}, {transform_indices = @transform_1, window_bounds = array<i64: 2, 1024>}]} {
    %c0 = arith.constant 0 : index
    %c0_0 = arith.constant 0 : index
    %0 = vector.load %arg1[%c0, %c0_0] : memref<2x1024xf32, #tpu.memory_space<vmem>>, vector<2x1024xf32>
    %cst = arith.constant dense<0xFF800000> : vector<2xf32>
    %1 = vector.multi_reduction <maximumf>, %0, %cst [1] : vector<2x1024xf32> to vector<2xf32>
    %2 = vector.shape_cast %1 : vector<2xf32> to vector<2x1xf32>
    %3 = vector.broadcast %2 : vector<2x1xf32> to vector<2x1024xf32>
    %4 = arith.subf %0, %3 : vector<2x1024xf32>
    %5 = math.exp %4 : vector<2x1024xf32>
    %cst_1 = arith.constant dense<0.000000e+00> : vector<2xf32>
    %6 = vector.multi_reduction <add>, %5, %cst_1 [1] : vector<2x1024xf32> to vector<2xf32>
    %7 = vector.shape_cast %6 : vector<2xf32> to vector<2x1xf32>
    %8 = tpu.reciprocal %7 : vector<2x1xf32> -> vector<2x1xf32>
    %cst_2 = arith.constant 0.899999976 : f32
    %9 = vector.broadcast %cst_2 : f32 to vector<2x1xf32>
    %10 = arith.mulf %8, %9 : vector<2x1xf32>
    %11 = vector.broadcast %10 : vector<2x1xf32> to vector<2x1024xf32>
    %12 = arith.mulf %5, %11 : vector<2x1024xf32>
    %cst_3 = arith.constant 9.76562514E-5 : f32
    %13 = vector.broadcast %cst_3 : f32 to vector<2x1024xf32>
    %14 = arith.addf %12, %13 : vector<2x1024xf32>
    %c0_4 = arith.constant 0 : index
    %c0_5 = arith.constant 0 : index
    %15 = vector.load %arg2[%c0_4, %c0_5] : memref<2x1024xf32, #tpu.memory_space<vmem>>, vector<2x1024xf32>
    tpu.vector_store %arg2[%c0_4, %c0_5], %14 {strides = array<i32>} : memref<2x1024xf32, #tpu.memory_space<vmem>>, vector<2x1024xf32>,
    return
  }
  func.func @transform_0(%arg0: i32) -> (i32, i32) {
    %c0_i32 = arith.constant 0 : i32
    %c0_i32_0 = arith.constant 0 : i32
    return %arg0, %c0_i32 : i32, i32
  }
  func.func @transform_1(%arg0: i32) -> (i32, i32) {
    %c0_i32 = arith.constant 0 : i32
    %c0_i32_0 = arith.constant 0 : i32
    return %arg0, %c0_i32 : i32, i32
  }
}

</mosaic_0001>

<llo_original>
// kernel: tpu_custom_call.1
$region0: #{tpu_custom_call.1}
  #allocation0 [shape = 'u32[]', space=smem, size = 0x4, offset = 0x4, fixed_abs, tag = 'smem constant byte address 0x4 - core index']
  #allocation1 [shape = 'u32[72,128]{1,0:T(1,128)}', space=vmem, size = 0x9000, scoped, tag = 'internal scratch']
  %s0 = inlined_call_operand.hbm [shape: f32[2,1024], index: 0, kind: input, shape index: {}]
  %s1 = inlined_call_operand.hbm [shape: f32[2,1024], index: 1, kind: output, shape index: {}]
  %s2 = sld [smem:[#allocation0]]
  $region18: #{tpu_custom_call.1} parent=0
    _
  %s4 = ssub.s32 1, %s2
  %s5 = scalar_select 0, %s4, %s2
  $region1: #{tpu_custom_call.1} parent=0
    #allocation2 [shape = 'u8[8192]{0}', space=vmem, size = 0x2000, scoped, tag = 'input window, operand 0, single buffered']
    #allocation3 [shape = 's32[1]{0}', space=sflag, size = 0x4, scoped, tag = 'scoped memory for tpu_custom_call.1']
    #allocation4 [shape = 's32[1]{0}', space=sflag, size = 0x4, scoped, tag = 'scoped memory for tpu_custom_call.1']
    #allocation5 [shape = 'u8[8192]{0}', space=vmem, size = 0x2000, scoped, tag = 'output window, operand 0, single buffered']
    %6 = vsyncpa [#allocation3], 0
    %7 = vsyncpa [#allocation4], 0
    // Predicated region
    $region2: #{tpu_custom_call.1} parent=1 // pred_check
      _
    $region3: #{tpu_custom_call.1} parent=1 // pred_check_branch
      %9 = sbr.rel (0) target = $region5
    $region4: #{tpu_custom_call.1} parent=1 // pred_region
      %11 = vsyncadd [#allocation3], 0
      %s13 = sshll.u32 %s0, 4
      %s14 = int_to_ptr.hbm [resolvable:$true] %s13
      %s15 = sshll.u32 [#allocation2], 4
      %s16 = int_to_ptr.vmem [resolvable:$true] %s15
      %18 = dma.hbm_to_vmem [thread:$0]  %s14, 256, %s16, [#allocation3]
    $region5: #{tpu_custom_call.1} parent=1 // pred_fallthru
      _
    // Predicated region
    $region6: #{tpu_custom_call.1} parent=1 // pred_check
      _
    $region7: #{tpu_custom_call.1} parent=1 // pred_check_branch
      %20 = sbr.rel (0) target = $region9
    $region8: #{tpu_custom_call.1} parent=1 // pred_region
      %22 = dma.done [#allocation3], 256
    $region9: #{tpu_custom_call.1} parent=1 // pred_fallthru
      _
    %v23 = vld [vmem:[#allocation2] sm:$0xff]
    %v24 = vld [vmem:[#allocation2 + $0x8] sm:$0xff]
    %27 = vst [vmem:[#allocation1] ss:$4 sm:$0xff] %v23
    %s28 = scalar_lea.vmem [#allocation1], 32
    %29 = vst [vmem:[%s28] ss:$4 sm:$0xff] %v24
    %v30 = vld.sshfl [vmem:[#allocation1] sm:$0xff pattern:$0x73625140]
    %v31 = vld.sshfl [vmem:[#allocation1 + $0x8] sm:$0xff pattern:$0x73625140]
    %v32 = vld.sshfl [vmem:[#allocation1 + $0x10] sm:$0xff pattern:$0x73625140]
    %v33 = vld.sshfl [vmem:[#allocation1 + $0x18] sm:$0xff pattern:$0x73625140]
    %v34 = vld.sshfl [vmem:[#allocation1 + $0x20] sm:$0xff pattern:$0x73625140]
    %v35 = vld.sshfl [vmem:[#allocation1 + $0x28] sm:$0xff pattern:$0x73625140]
    %v36 = vld.sshfl [vmem:[#allocation1 + $0x30] sm:$0xff pattern:$0x73625140]
    %v37 = vld.sshfl [vmem:[#allocation1 + $0x38] sm:$0xff pattern:$0x73625140]
    %vm46 = vcmask 1041408
    %v47 = vsel %vm46, %v30, -inf
    %v48 = vsel %vm46, %v31, -inf
    %v49 = vsel %vm46, %v32, -inf
    %v50 = vsel %vm46, %v33, -inf
    %v51 = vsel %vm46, %v34, -inf
    %v52 = vmax.f32 %v47, %v51
    %v53 = vsel %vm46, %v35, -inf
    %v54 = vmax.f32 %v48, %v53
    %v55 = vsel %vm46, %v36, -inf
    %v56 = vmax.f32 %v49, %v55
    %v57 = vsel %vm46, %v37, -inf
    %v58 = vmax.f32 %v50, %v57
    %v59 = vmax.f32 %v52, %v54
    %v60 = vmax.f32 %v56, %v58
    %v61 = vmax.f32 %v59, %v60
    %62 = vmax.xlane.f32.xlu0 %v61
    %v63 = vpop.xlane.xlu0 %62
    %v66 = vunpack.c.l.s4 269488144
    %v67 = vunpack.c.0.s8 %v66
    %v68 = vperm.slane %v63, %v67
    %v70 = vsub.f32 %v23, %v68
    %v71 = vsub.f32 %v24, %v68
    %v72 = vmul.f32 %v70, 1.442695
    %v73 = vpow.pop %v72
    %v74 = vmul.f32 %v71, 1.442695
    %v75 = vpow.pop %v74
    %78 = vst [vmem:[#allocation1] ss:$4 sm:$0xff] %v73
    %s79 = scalar_lea.vmem [#allocation1], 32
    %80 = vst [vmem:[%s79] ss:$4 sm:$0xff] %v75
    %v81 = vld.sshfl [vmem:[#allocation1] sm:$0xff pattern:$0x73625140]
    %v82 = vld.sshfl [vmem:[#allocation1 + $0x8] sm:$0xff pattern:$0x73625140]
    %v83 = vld.sshfl [vmem:[#allocation1 + $0x10] sm:$0xff pattern:$0x73625140]
    %v84 = vld.sshfl [vmem:[#allocation1 + $0x18] sm:$0xff pattern:$0x73625140]
    %v85 = vld.sshfl [vmem:[#allocation1 + $0x20] sm:$0xff pattern:$0x73625140]
    %v86 = vld.sshfl [vmem:[#allocation1 + $0x28] sm:$0xff pattern:$0x73625140]
    %v87 = vld.sshfl [vmem:[#allocation1 + $0x30] sm:$0xff pattern:$0x73625140]
    %v88 = vld.sshfl [vmem:[#allocation1 + $0x38] sm:$0xff pattern:$0x73625140]
    %v97 = vsel %vm46, %v81, 0.0
    %v98 = vsel %vm46, %v82, 0.0
    %v99 = vadd.f32 %v97, %v98
    %v100 = vsel %vm46, %v83, 0.0
    %v101 = vadd.f32 %v99, %v100
    %v102 = vsel %vm46, %v84, 0.0
    %v103 = vadd.f32 %v101, %v102
    %v104 = vsel %vm46, %v85, 0.0
    %v105 = vadd.f32 %v103, %v104
    %v106 = vsel %vm46, %v86, 0.0
    %v107 = vadd.f32 %v105, %v106
    %v108 = vsel %vm46, %v87, 0.0
    %v109 = vadd.f32 %v107, %v108
    %v110 = vsel %vm46, %v88, 0.0
    %v111 = vadd.f32 %v109, %v110
    %112 = vadd.xlane.f32.xlu0 %v111
    %v113 = vpop.xlane.xlu0 %112
    %v114 = vrcp.pop %v113
    %v115 = vmul.f32 %v113, %v114
    %v116 = vsub.f32 1.0, %v115
    %v117 = vmul.f32 %v114, %v116
    %v118 = vadd.f32 %v114, %v117
    %vm119 = vweird.f32 %v113
    %vm120 = vweird.f32 %v114
    %vm121 = vmor %vm119, %vm120
    %v122 = vsel %vm121, %v114, %v118
    %v123 = vand.u32 2147483647, %v113
    %vm124 = vcmp.eq.f32.partialorder %v123, 8.507059e+37
    %v125 = vand.u32 %v113, 2147483648
    %v126 = vor.u32 1.1754944e-38, %v125
    %v127 = vsel %vm124, %v126, %v122
    %v128 = vmul.f32 %v127, 0.9
    %v131 = vunpack.c.l.s4 269488144
    %v132 = vunpack.c.0.s8 %v131
    %v133 = vperm.slane %v128, %v132
    %v135 = vmul.f32 %v73, %v133
    %v136 = vmul.f32 %v75, %v133
    %v137 = vadd.f32 %v135, 9.765625e-05
    %v138 = vadd.f32 %v136, 9.765625e-05
    %139 = vst [vmem:[#allocation5] sm:$0xff] %v137
    %140 = vst [vmem:[#allocation5 + $0x8] sm:$0xff] %v138
    // Predicated region
    $region10: #{tpu_custom_call.1} parent=1 // pred_check
      _
    $region11: #{tpu_custom_call.1} parent=1 // pred_check_branch
      %142 = sbr.rel (0) target = $region13
    $region12: #{tpu_custom_call.1} parent=1 // pred_region
      %144 = vsyncadd [#allocation4], 0
      %s146 = sshll.u32 [#allocation5], 4
      %s147 = int_to_ptr.vmem [resolvable:$true] %s146
      %s148 = sshll.u32 %s1, 4
      %s149 = int_to_ptr.hbm [resolvable:$true] %s148
      %151 = dma.vmem_to_hbm [thread:$0]  %s147, 256, %s149, [#allocation4]
    $region13: #{tpu_custom_call.1} parent=1 // pred_fallthru
      _
    // Predicated region
    $region14: #{tpu_custom_call.1} parent=1 // pred_check
      _
    $region15: #{tpu_custom_call.1} parent=1 // pred_check_branch
      %153 = sbr.rel (0) target = $region17
    $region16: #{tpu_custom_call.1} parent=1 // pred_region
      %155 = dma.done [#allocation4], 256
    $region17: #{tpu_custom_call.1} parent=1 // pred_fallthru
      _
    %156 = vsyncpa [#allocation3], 1
    %157 = vsyncpa [#allocation4], 1

</llo_original>
